<compile_context>
chip_gen: v5e
topology: v5e:2x2
jax: 0.10.0
libtpu: 0.0.40
codegen_flags: <defaults>
</compile_context>

<pallas_src>
import functools

import jax
import jax.numpy as jnp
import numpy as np
from jax.experimental import pallas as pl
from jax.experimental.pallas import tpu as pltpu


def _copy_whole_kernel(w_hbm, o_hbm, sem):
    # forward(): return self.weight  ->  one whole-array HBM->HBM DMA.
    cp = pltpu.make_async_copy(w_hbm, o_hbm, sem)
    cp.start()
    cp.wait()


def _copy_split_kernel(w_hbm, o_hbm, sem, *, rows_per_chunk):
    # Each grid step copies a disjoint row slab.  With
    # dimension_semantics=("parallel",) the two steps can be sharded across
    # the two TensorCores on v7x (independent DMA queues per TC).
    i = pl.program_id(0)
    start = pl.multiple_of(i * rows_per_chunk, 8)
    cp = pltpu.make_async_copy(
        w_hbm.at[pl.ds(start, rows_per_chunk)],
        o_hbm.at[pl.ds(start, rows_per_chunk)],
        sem,
    )
    cp.start()
    cp.wait()


def _min_sublanes(dtype) -> int:
    # Sub-32-bit dtypes pack along sublanes: keep row-slab splits aligned.
    itemsize = jnp.dtype(dtype).itemsize
    return {4: 8, 2: 16, 1: 32}.get(itemsize, 8)


def my_module_forward(weight, *, donate=False, split_threshold_bytes=1 << 20):
    """Pallas equivalent of MyModule.forward(): returns the weight tensor.

    donate=False (default): out-of-place copy via a direct HBM->HBM DMA.
    donate=True: caller guarantees the weight buffer is donated / not reused,
                 so the identity is free — return the array, no kernel at all.
    """
    if donate:
        # Identity on a donated buffer: any copy would be pure waste.
        return weight

    shape = weight.shape
    total_bytes = weight.size * jnp.dtype(weight.dtype).itemsize

    # Split the copy into 2 row-slabs only when it is big enough to matter and
    # the leading dim splits cleanly on sublane-aligned boundaries.
    n_chunks = 1
    rows_per_chunk = None
    if (
        weight.ndim >= 2
        and total_bytes >= split_threshold_bytes
        and shape[0] % (2 * _min_sublanes(weight.dtype)) == 0
    ):
        n_chunks = 2
        rows_per_chunk = shape[0] // 2

    if n_chunks == 1:
        kernel = _copy_whole_kernel
        semantics = ("arbitrary",)
    else:
        kernel = functools.partial(_copy_split_kernel, rows_per_chunk=rows_per_chunk)
        semantics = ("parallel",)  # lets v7x shard the two DMAs across its 2 TCs

    return pl.pallas_call(
        kernel,
        out_shape=jax.ShapeDtypeStruct(shape, weight.dtype),
        grid_spec=pltpu.PrefetchScalarGridSpec(
            num_scalar_prefetch=0,
            grid=(n_chunks,),
            in_specs=[pl.BlockSpec(memory_space=pl.ANY)],   # raw HBM ref, no auto-DMA
            out_specs=pl.BlockSpec(memory_space=pl.ANY),    # raw HBM ref, no auto-DMA
            scratch_shapes=[pltpu.SemaphoreType.DMA(())],
        ),
        compiler_params=pltpu.CompilerParams(
            dimension_semantics=semantics,
        ),
        cost_estimate=pl.CostEstimate(
            flops=0, transcendentals=0, bytes_accessed=2 * total_bytes
        ),
    )(weight)


if __name__ == "__main__":
    key = jax.random.PRNGKey(0)
    k1, k2 = jax.random.split(key)

    # --- small weight: single whole-array HBM->HBM DMA path ------------------
    w_small = jax.random.normal(k1, (64, 256), dtype=jnp.float32)
    out_small = jax.block_until_ready(my_module_forward(w_small))
    assert out_small.shape == (64, 256) and out_small.dtype == jnp.float32
    np.testing.assert_array_equal(np.asarray(out_small), np.asarray(w_small))

    # --- larger weight: two-slab DMA path (parallel grid axis; 2 TCs on v7x) --
    w_big = jax.random.normal(k2, (256, 512), dtype=jnp.float32)  # 512 KiB
    out_big = jax.block_until_ready(
        my_module_forward(w_big, split_threshold_bytes=1 << 16)
    )
    assert out_big.shape == (256, 512) and out_big.dtype == jnp.float32
    np.testing.assert_array_equal(np.asarray(out_big), np.asarray(w_big))

    # --- donated / identity fast path: no kernel, no HBM traffic --------------
    out_id = my_module_forward(w_small, donate=True)
    np.testing.assert_array_equal(np.asarray(out_id), np.asarray(w_small))

    print("KERNEL_OK")
</pallas_src>

<mosaic_0001>
module attributes {stable_mosaic.version = 11 : i64} {
  func.func @_copy_whole_kernel(%arg0: i32, %arg1: memref<64x256xf32, #tpu.memory_space<any>>, %arg2: memref<64x256xf32, #tpu.memory_space<any>>, %arg3: memref<!tpu.dma_semaphore, #tpu.memory_space<semaphore_mem>>) attributes {dimension_semantics = [#tpu.dimension_semantics<arbitrary>], iteration_bounds = array<i64: 1>, scalar_prefetch = 0 : i64, scratch_operands = 1 : i64, tpu.core_type = #tpu.core_type<tc>, window_params = [{}, {}]} {
    tpu.enqueue_dma source(%arg1 : memref<64x256xf32, #tpu.memory_space<any>>) target(%arg2 : memref<64x256xf32, #tpu.memory_space<any>>) target_semaphore(%arg3 : memref<!tpu.dma_semaphore, #tpu.memory_space<semaphore_mem>>)
    tpu.wait_dma2 semaphore(%arg3 : memref<!tpu.dma_semaphore, #tpu.memory_space<semaphore_mem>>) src(%arg1 : memref<64x256xf32, #tpu.memory_space<any>>) dst(%arg2 : memref<64x256xf32, #tpu.memory_space<any>>)
    return
  }
}

</mosaic_0001>

<llo_original>
// kernel: tpu_custom_call.1
$region0: #{tpu_custom_call.1}
  #allocation0 [shape = 'u32[]', space=smem, size = 0x4, offset = 0x4, fixed_abs, tag = 'smem constant byte address 0x4 - core index']
  #allocation1 [shape = 'u32[72,128]{1,0:T(1,128)}', space=vmem, size = 0x9000, scoped, tag = 'internal scratch']
  #allocation2 [shape = 's32[1]{0}', space=sflag, size = 0x4, scoped, tag = 'scratch operand']
  #allocation3 [shape = 's32[]', space=sflag, size = 0x4, offset = 0, fixed_abs, tag = 'sflag constant byte address 0x0 - dummy sync flag']
  #allocation4 [shape = 'u32[0]{0}', space=smem, size = 0, offset = 0, fixed_abs, tag = 'smem constant byte address 0x0 - null']
  %s0 = inlined_call_operand.hbm [shape: f32[64,256], index: 0, kind: input, shape index: {}]
  %s1 = inlined_call_operand.hbm [shape: f32[64,256], index: 1, kind: output, shape index: {}]
  %s2 = sld [smem:[#allocation0]]
  $region2: #{tpu_custom_call.1} parent=0
    _
  %s4 = ssub.s32 1, %s2
  %s5 = scalar_select 0, %s4, %s2
  %s7 = sshll.u32 1, 14
  %s8 = sxor.u32 4294967295, %s7
  %s10 = sshll.u32 %s0, 4
  %s11 = int_to_ptr.hbm [resolvable:$true] %s10
  %s12 = sshll.u32 %s1, 4
  %s13 = int_to_ptr.hbm [resolvable:$true] %s12
  %16 = dma.general %s11, 2048, %s13, [#allocation2], [#allocation3], [#allocation4], 0, 0
  %s17 = smul.u32 8, 8
  %s18 = smul.u32 %s17, 2
  %s19 = sshll.u32 %s18, 4
  %20 = dma.done [#allocation2], %s19
  %21 = vsyncmov [#allocation2]
  %s22 = vpop.sfrf %21
  %p23 = scmp.eq.s32.totalorder %s22, 0
  %p24 = pneg %p23
  %26 = shalt.err (%p24)

</llo_original>
